<compile_context>
chip_gen: v7x
topology: tpu7x:2x2x1
jax: 0.10.0
libtpu: 0.0.40
codegen_flags: <defaults>
</compile_context>

<pallas_src>
import math
import functools

import jax
import jax.numpy as jnp
import numpy as np
from jax.experimental import pallas as pl
from jax.experimental.pallas import tpu as pltpu


# ----------------------------- in-kernel helpers -----------------------------

def _fused_gelu(x):
    # matches torch: x * 0.5 * (1.0 + erf(x / 1.41421))
    return x * 0.5 * (1.0 + jax.lax.erf(x / 1.41421))


def _layernorm(x, g, b, eps=1e-5):
    mu = jnp.mean(x, axis=-1, keepdims=True)
    var = jnp.mean(jnp.square(x - mu), axis=-1, keepdims=True)
    return (x - mu) * jax.lax.rsqrt(var + eps) * g + b


# ------------------------- kernel 1: attention (batch 0) ---------------------

def attention_kernel(num_heads, x_ref, ln1g_ref, ln1b_ref, wqkv_ref, wout_ref,
                     o_ref, vals_scr):
    S, E = o_ref.shape
    H = num_heads
    hd = E // H

    # Only batch 0 is needed: the module adds attention_block(_X)[0] to every batch elem.
    x0 = x_ref[0].astype(jnp.float32)                               # (S, E)
    xn = _layernorm(x0, ln1g_ref[...], ln1b_ref[...])

    # bf16 operands, f32 accumulation.
    qkv = jnp.dot(xn.astype(jnp.bfloat16), wqkv_ref[...],
                  preferred_element_type=jnp.float32)               # (S, 3E)

    inv_sqrt = 1.0 / math.sqrt(hd)
    # Module layout: reshape(S, H, 3*hd) -> per-head columns [q_h | k_h | v_h].
    # Static per-head loop on 128-aligned lane slices; no stack/concatenate relayouts.
    for h in range(H):
        base = 3 * h * hd
        q_h = qkv[:, base:base + hd].astype(jnp.bfloat16)           # (S, hd)
        k_h = qkv[:, base + hd:base + 2 * hd].astype(jnp.bfloat16)  # (S, hd)
        v_h = qkv[:, base + 2 * hd:base + 3 * hd].astype(jnp.bfloat16)

        # q_h @ k_h^T via last-dim/last-dim contraction (no explicit transpose).
        logits = jax.lax.dot_general(
            q_h, k_h, (((1,), (1,)), ((), ())),
            preferred_element_type=jnp.float32) * inv_sqrt          # (S, S) f32

        m = jnp.max(logits, axis=-1, keepdims=True)
        e = jnp.exp(logits - m)
        p = e * pl.reciprocal(jnp.sum(e, axis=-1, keepdims=True), approx=True)

        vals_h = jnp.dot(p.astype(jnp.bfloat16), v_h,
                         preferred_element_type=jnp.float32)        # (S, hd) f32
        # Write the head result into its lane slice of the (S, E) bf16 scratch.
        vals_scr[:, h * hd:(h + 1) * hd] = vals_h.astype(vals_scr.dtype)

    out = jnp.dot(vals_scr[...], wout_ref[...],
                  preferred_element_type=jnp.float32)               # (S, E) f32
    o_ref[...] = out.astype(o_ref.dtype)                            # bf16 writeback


# ------------------- kernel 2: residual + MLP + final norm -------------------

def mlp_kernel(x_ref, attn0_ref, ln2g_ref, ln2b_ref, w1_ref, w2_ref,
               ln3g_ref, ln3b_ref, o_ref):
    bb, S, E = x_ref.shape

    # Residual add of the broadcast batch-0 attention output (f32 add, attn0 stored bf16).
    x = x_ref[...].astype(jnp.float32) + attn0_ref[...].astype(jnp.float32)  # (bb,S,E)

    # Fold batch elements into the matmul M dimension (MXU row utilization).
    x2 = x.reshape(bb * S, E)

    xn = _layernorm(x2, ln2g_ref[...], ln2b_ref[...])
    h1 = jnp.dot(xn.astype(jnp.bfloat16), w1_ref[...],
                 preferred_element_type=jnp.float32)
    h1 = _fused_gelu(h1)                                            # dropout1 p=0 -> id
    h2 = jnp.dot(h1.astype(jnp.bfloat16), w2_ref[...],
                 preferred_element_type=jnp.float32)
    h2 = _fused_gelu(h2)                                            # dropout2 p=0 -> id

    y = x2 + h2
    y = _layernorm(y, ln3g_ref[...], ln3b_ref[...])                 # final_norm
    o_ref[...] = y.reshape(bb, S, E).astype(o_ref.dtype)


# --------------------------------- wrapper -----------------------------------

def prepare_params(params):
    """Cast the matmul weight matrices to bf16 ONCE (hoisted out of the forward path)."""
    ln1g, ln1b, wqkv, wout, ln2g, ln2b, w1, w2, ln3g, ln3b = params
    bf = jnp.bfloat16
    return (ln1g, ln1b, wqkv.astype(bf), wout.astype(bf),
            ln2g, ln2b, w1.astype(bf), w2.astype(bf), ln3g, ln3b)


def _pick_block_b(B, S, target_rows=256):
    """Largest divisor of B whose block keeps <= target_rows matmul rows per grid step."""
    bb = 1
    for cand in range(1, B + 1):
        if B % cand == 0 and cand * S <= target_rows:
            bb = cand
    return bb


def encoder_forward(x, params, num_heads, attention_mask=None):
    ln1g, ln1b, wqkv, wout, ln2g, ln2b, w1, w2, ln3g, ln3b = params
    B, S, E = x.shape
    hidden = w1.shape[1]
    assert E % num_heads == 0

    # Explicit VMEM budget: above v5e's 16 MiB scoped default, within physical
    # VMEM on every generation (v7x = 64 MiB physical).
    vmem_lim = 32 * 1024 * 1024

    # ---- kernel 1: attention output for batch 0 only (the `[0]` quirk) ----
    attn0 = pl.pallas_call(
        functools.partial(attention_kernel, num_heads),
        out_shape=jax.ShapeDtypeStruct((S, E), jnp.bfloat16),
        grid=(1,),
        in_specs=[
            pl.BlockSpec((1, S, E), lambda i: (0, 0, 0)),   # only batch 0 is DMA'd
            pl.BlockSpec((1, E), lambda i: (0, 0)),
            pl.BlockSpec((1, E), lambda i: (0, 0)),
            pl.BlockSpec((E, 3 * E), lambda i: (0, 0)),
            pl.BlockSpec((E, E), lambda i: (0, 0)),
        ],
        out_specs=pl.BlockSpec((S, E), lambda i: (0, 0)),
        scratch_shapes=[pltpu.VMEM((S, E), jnp.bfloat16)],   # per-head lane-slice accumulator
        compiler_params=pltpu.CompilerParams(
            dimension_semantics=("arbitrary",),
            vmem_limit_bytes=vmem_lim),
    )(x, ln1g, ln1b, wqkv, wout)

    # ---- kernel 2: residual + MLP + final norm, parallel over batch blocks ----
    bb = _pick_block_b(B, S)
    out = pl.pallas_call(
        mlp_kernel,
        out_shape=jax.ShapeDtypeStruct((B, S, E), x.dtype),
        grid=(B // bb,),
        in_specs=[
            pl.BlockSpec((bb, S, E), lambda b: (b, 0, 0)),
            pl.BlockSpec((S, E), lambda b: (0, 0)),          # attn0: grid-resident
            pl.BlockSpec((1, E), lambda b: (0, 0)),
            pl.BlockSpec((1, E), lambda b: (0, 0)),
            pl.BlockSpec((E, hidden), lambda b: (0, 0)),
            pl.BlockSpec((hidden, E), lambda b: (0, 0)),
            pl.BlockSpec((1, E), lambda b: (0, 0)),
            pl.BlockSpec((1, E), lambda b: (0, 0)),
        ],
        out_specs=pl.BlockSpec((bb, S, E), lambda b: (b, 0, 0)),
        compiler_params=pltpu.CompilerParams(
            dimension_semantics=("parallel",),
            vmem_limit_bytes=vmem_lim),
    )(x, attn0, ln2g, ln2b, w1, w2, ln3g, ln3b)

    # module returns (X, attention_mask)
    return out, attention_mask


# --------------------------- pure-JAX reference -------------------------------

def encoder_reference(x, params, num_heads):
    ln1g, ln1b, wqkv, wout, ln2g, ln2b, w1, w2, ln3g, ln3b = params
    B, S, E = x.shape
    H = num_heads
    hd = E // H

    def ln(v, g, b, eps=1e-5):
        mu = jnp.mean(v, axis=-1, keepdims=True)
        var = jnp.mean(jnp.square(v - mu), axis=-1, keepdims=True)
        return (v - mu) / jnp.sqrt(var + eps) * g + b

    def gelu(v):
        return v * 0.5 * (1.0 + jax.lax.erf(v / 1.41421))

    xn = ln(x, ln1g, ln1b)
    qkv = xn @ wqkv                                            # (B, S, 3E)
    qkv = qkv.reshape(B, S, H, 3 * hd).transpose(0, 2, 1, 3)   # (B, H, S, 3hd)
    q, k, v = qkv[..., :hd], qkv[..., hd:2 * hd], qkv[..., 2 * hd:]
    logits = jnp.einsum('bhqd,bhkd->bhqk', q, k) / math.sqrt(hd)
    attn = jax.nn.softmax(logits, axis=-1)
    vals = jnp.einsum('bhqk,bhkd->bhqd', attn, v)
    vals = vals.transpose(0, 2, 1, 3).reshape(B, S, E)
    attn_out = vals @ wout
    x = x + attn_out[0]                                        # the [0] quirk
    xn = ln(x, ln2g, ln2b)
    h = gelu(xn @ w1)
    h = gelu(h @ w2)
    x = x + h
    return ln(x, ln3g, ln3b)


# ----------------------------------- main -------------------------------------

if __name__ == "__main__":
    # small, MXU/lane-friendly shapes consistent with the module
    B, S, E, H = 2, 16, 256, 2          # head_dims = 128 (lane aligned)
    mlp_hidden = 4 * E

    key = jax.random.PRNGKey(0)
    k_qkv, k_out, k_fc1, k_fc2, k_x = jax.random.split(key, 5)

    # PyTorch parameter shapes (out_features, in_features); transposed for the kernel.
    w_qkv = jax.random.normal(k_qkv, (3 * E, E), jnp.float32) * 0.02
    w_out = jax.random.normal(k_out, (E, E), jnp.float32) * 0.02
    w_fc1 = jax.random.normal(k_fc1, (mlp_hidden, E), jnp.float32) * 0.02
    w_fc2 = jax.random.normal(k_fc2, (E, mlp_hidden), jnp.float32) * 0.02

    ones = jnp.ones((1, E), jnp.float32)    # nn.LayerNorm default weight
    zeros = jnp.zeros((1, E), jnp.float32)  # nn.LayerNorm default bias

    params_f32 = (ones, zeros,               # attention_norm
                  w_qkv.T, w_out.T,          # qkv, fc_out (bias=False)
                  ones, zeros,               # mlp_norm
                  w_fc1.T, w_fc2.T,          # fc1, fc2 (bias=False)
                  ones, zeros)               # final_norm

    # bf16 weight cast done ONCE, outside the per-forward path.
    params = prepare_params(params_f32)

    x = jax.random.normal(k_x, (B, S, E), jnp.float32)

    out, mask = encoder_forward(x, params, H, attention_mask=None)
    out = jax.block_until_ready(out)

    ref = encoder_reference(x, params_f32, H)
    # Tolerance accounts for bf16 matmul operands + bf16 attn0 roundtrip (f32 accumulation
    # everywhere); LayerNorm/softmax/GELU remain f32.
    np.testing.assert_allclose(np.asarray(out), np.asarray(ref),
                               rtol=3e-3, atol=3e-3)
    print("KERNEL_OK")
</pallas_src>

<mosaic_0001>
module attributes {stable_mosaic.version = 11 : i64} {
  func.func @attention_kernel(%arg0: i32, %arg1: memref<1x16x256xf32, #tpu.memory_space<vmem>>, %arg2: memref<1x256xf32, #tpu.memory_space<vmem>>, %arg3: memref<1x256xf32, #tpu.memory_space<vmem>>, %arg4: memref<256x768xbf16, #tpu.memory_space<vmem>>, %arg5: memref<256x256xbf16, #tpu.memory_space<vmem>>, %arg6: memref<16x256xbf16, #tpu.memory_space<vmem>>, %arg7: memref<16x256xbf16, #tpu.memory_space<vmem>>) attributes {dimension_semantics = [#tpu.dimension_semantics<arbitrary>], iteration_bounds = array<i64: 1>, scalar_prefetch = 0 : i64, scratch_operands = 1 : i64, tpu.core_type = #tpu.core_type<tc>, window_params = [{transform_indices = @transform_0, window_bounds = array<i64: 1, 16, 256>}, {pipeline_mode = #tpu.pipeline_mode<synchronous>, transform_indices = @transform_1, window_bounds = array<i64: 1, 256>}, {pipeline_mode = #tpu.pipeline_mode<synchronous>, transform_indices = @transform_2, window_bounds = array<i64: 1, 256>}, {pipeline_mode = #tpu.pipeline_mode<synchronous>, transform_indices = @transform_3, window_bounds = array<i64: 256, 768>}, {pipeline_mode = #tpu.pipeline_mode<synchronous>, transform_indices = @transform_4, window_bounds = array<i64: 256, 256>}, {pipeline_mode = #tpu.pipeline_mode<synchronous>, transform_indices = @transform_5, window_bounds = array<i64: 16, 256>}]} {
    %c0 = arith.constant 0 : index
    %c0_0 = arith.constant 0 : index
    %c0_1 = arith.constant 0 : index
    %0 = vector.load %arg1[%c0, %c0_0, %c0_1] : memref<1x16x256xf32, #tpu.memory_space<vmem>>, vector<1x16x256xf32>
    %1 = vector.shape_cast %0 : vector<1x16x256xf32> to vector<16x256xf32>
    %c0_2 = arith.constant 0 : index
    %c0_3 = arith.constant 0 : index
    %2 = vector.load %arg2[%c0_2, %c0_3] : memref<1x256xf32, #tpu.memory_space<vmem>>, vector<1x256xf32>
    %c0_4 = arith.constant 0 : index
    %c0_5 = arith.constant 0 : index
    %3 = vector.load %arg3[%c0_4, %c0_5] : memref<1x256xf32, #tpu.memory_space<vmem>>, vector<1x256xf32>
    %cst = arith.constant dense<0.000000e+00> : vector<16xf32>
    %4 = vector.multi_reduction <add>, %1, %cst [1] : vector<16x256xf32> to vector<16xf32>
    %5 = vector.shape_cast %4 : vector<16xf32> to vector<16x1xf32>
    %cst_6 = arith.constant 2.560000e+02 : f32
    %6 = vector.broadcast %cst_6 : f32 to vector<16x1xf32>
    %7 = arith.divf %5, %6 : vector<16x1xf32>
    %8 = vector.broadcast %7 : vector<16x1xf32> to vector<16x256xf32>
    %9 = arith.subf %1, %8 : vector<16x256xf32>
    %10 = arith.mulf %9, %9 : vector<16x256xf32>
    %cst_7 = arith.constant dense<0.000000e+00> : vector<16xf32>
    %11 = vector.multi_reduction <add>, %10, %cst_7 [1] : vector<16x256xf32> to vector<16xf32>
    %12 = vector.shape_cast %11 : vector<16xf32> to vector<16x1xf32>
    %cst_8 = arith.constant 2.560000e+02 : f32
    %13 = vector.broadcast %cst_8 : f32 to vector<16x1xf32>
    %14 = arith.divf %12, %13 : vector<16x1xf32>
    %15 = vector.broadcast %7 : vector<16x1xf32> to vector<16x256xf32>
    %16 = arith.subf %1, %15 : vector<16x256xf32>
    %cst_9 = arith.constant 9.99999974E-6 : f32
    %17 = vector.broadcast %cst_9 : f32 to vector<16x1xf32>
    %18 = arith.addf %14, %17 : vector<16x1xf32>
    %19 = math.rsqrt %18 : vector<16x1xf32>
    %20 = vector.broadcast %19 : vector<16x1xf32> to vector<16x256xf32>
    %21 = arith.mulf %16, %20 : vector<16x256xf32>
    %22 = vector.broadcast %2 : vector<1x256xf32> to vector<16x256xf32>
    %23 = arith.mulf %21, %22 : vector<16x256xf32>
    %24 = vector.broadcast %3 : vector<1x256xf32> to vector<16x256xf32>
    %25 = arith.addf %23, %24 : vector<16x256xf32>
    %26 = arith.truncf %25 : vector<16x256xf32> to vector<16x256xbf16>
    %c0_10 = arith.constant 0 : index
    %c0_11 = arith.constant 0 : index
    %27 = vector.load %arg4[%c0_10, %c0_11] : memref<256x768xbf16, #tpu.memory_space<vmem>>, vector<256x768xbf16>
    %cst_12 = arith.constant dense<0.000000e+00> : vector<16x768xf32>
    %28 = tpu.matmul %26, %27, %cst_12 {dimension_numbers = #tpu.dot_dimension_numbers<[1], [0], [0], [1], [0, 0, 1, 1], [], []>} : vector<16x256xbf16>, vector<256x768xbf16>, vector<16x768xf32> -> vector<16x768xf32>
    %29 = vector.extract_strided_slice %28 {offsets = [0, 0], sizes = [16, 128], strides = [1, 1]} : vector<16x768xf32> to vector<16x128xf32>
    %30 = arith.truncf %29 : vector<16x128xf32> to vector<16x128xbf16>
    %31 = vector.extract_strided_slice %28 {offsets = [0, 128], sizes = [16, 128], strides = [1, 1]} : vector<16x768xf32> to vector<16x128xf32>
    %32 = arith.truncf %31 : vector<16x128xf32> to vector<16x128xbf16>
    %33 = vector.extract_strided_slice %28 {offsets = [0, 256], sizes = [16, 128], strides = [1, 1]} : vector<16x768xf32> to vector<16x128xf32>
    %34 = arith.truncf %33 : vector<16x128xf32> to vector<16x128xbf16>
    %cst_13 = arith.constant dense<0.000000e+00> : vector<16x16xf32>
    %35 = tpu.matmul %30, %32, %cst_13 {dimension_numbers = #tpu.dot_dimension_numbers<[1], [1], [0], [0], [0, 0, 1, 0], [], []>} : vector<16x128xbf16>, vector<16x128xbf16>, vector<16x16xf32> -> vector<16x16xf32>
    %cst_14 = arith.constant 0.0883883461 : f32
    %36 = vector.broadcast %cst_14 : f32 to vector<16x16xf32>
    %37 = arith.mulf %35, %36 : vector<16x16xf32>
    %cst_15 = arith.constant dense<0xFF800000> : vector<16xf32>
    %38 = vector.multi_reduction <maximumf>, %37, %cst_15 [1] : vector<16x16xf32> to vector<16xf32>
    %39 = vector.shape_cast %38 : vector<16xf32> to vector<16x1xf32>
    %40 = vector.broadcast %39 : vector<16x1xf32> to vector<16x16xf32>
    %41 = arith.subf %37, %40 : vector<16x16xf32>
    %42 = math.exp %41 : vector<16x16xf32>
    %cst_16 = arith.constant dense<0.000000e+00> : vector<16xf32>
    %43 = vector.multi_reduction <add>, %42, %cst_16 [1] : vector<16x16xf32> to vector<16xf32>
    %44 = vector.shape_cast %43 : vector<16xf32> to vector<16x1xf32>
    %45 = tpu.reciprocal %44 {approx = true} : vector<16x1xf32> -> vector<16x1xf32>
    %46 = vector.broadcast %45 : vector<16x1xf32> to vector<16x16xf32>
    %47 = arith.mulf %42, %46 : vector<16x16xf32>
    %48 = arith.truncf %47 : vector<16x16xf32> to vector<16x16xbf16>
    %cst_17 = arith.constant dense<0.000000e+00> : vector<16x128xf32>
    %49 = tpu.matmul %48, %34, %cst_17 {dimension_numbers = #tpu.dot_dimension_numbers<[1], [0], [0], [1], [0, 0, 1, 1], [], []>} : vector<16x16xbf16>, vector<16x128xbf16>, vector<16x128xf32> -> vector<16x128xf32>
    %50 = arith.truncf %49 : vector<16x128xf32> to vector<16x128xbf16>
    %c0_18 = arith.constant 0 : index
    %c0_19 = arith.constant 0 : index
    %51 = vector.load %arg7[%c0_18, %c0_19] : memref<16x256xbf16, #tpu.memory_space<vmem>>, vector<16x128xbf16>
    tpu.vector_store %arg7[%c0_18, %c0_19], %50 {strides = array<i32>} : memref<16x256xbf16, #tpu.memory_space<vmem>>, vector<16x128xbf16>,
    %52 = vector.extract_strided_slice %28 {offsets = [0, 384], sizes = [16, 128], strides = [1, 1]} : vector<16x768xf32> to vector<16x128xf32>
    %53 = arith.truncf %52 : vector<16x128xf32> to vector<16x128xbf16>
    %54 = vector.extract_strided_slice %28 {offsets = [0, 512], sizes = [16, 128], strides = [1, 1]} : vector<16x768xf32> to vector<16x128xf32>
    %55 = arith.truncf %54 : vector<16x128xf32> to vector<16x128xbf16>
    %56 = vector.extract_strided_slice %28 {offsets = [0, 640], sizes = [16, 128], strides = [1, 1]} : vector<16x768xf32> to vector<16x128xf32>
    %57 = arith.truncf %56 : vector<16x128xf32> to vector<16x128xbf16>
    %cst_20 = arith.constant dense<0.000000e+00> : vector<16x16xf32>
    %58 = tpu.matmul %53, %55, %cst_20 {dimension_numbers = #tpu.dot_dimension_numbers<[1], [1], [0], [0], [0, 0, 1, 0], [], []>} : vector<16x128xbf16>, vector<16x128xbf16>, vector<16x16xf32> -> vector<16x16xf32>
    %cst_21 = arith.constant 0.0883883461 : f32
    %59 = vector.broadcast %cst_21 : f32 to vector<16x16xf32>
    %60 = arith.mulf %58, %59 : vector<16x16xf32>
    %cst_22 = arith.constant dense<0xFF800000> : vector<16xf32>
    %61 = vector.multi_reduction <maximumf>, %60, %cst_22 [1] : vector<16x16xf32> to vector<16xf32>
    %62 = vector.shape_cast %61 : vector<16xf32> to vector<16x1xf32>
    %63 = vector.broadcast %62 : vector<16x1xf32> to vector<16x16xf32>
    %64 = arith.subf %60, %63 : vector<16x16xf32>
    %65 = math.exp %64 : vector<16x16xf32>
    %cst_23 = arith.constant dense<0.000000e+00> : vector<16xf32>
    %66 = vector.multi_reduction <add>, %65, %cst_23 [1] : vector<16x16xf32> to vector<16xf32>
    %67 = vector.shape_cast %66 : vector<16xf32> to vector<16x1xf32>
    %68 = tpu.reciprocal %67 {approx = true} : vector<16x1xf32> -> vector<16x1xf32>
    %69 = vector.broadcast %68 : vector<16x1xf32> to vector<16x16xf32>
    %70 = arith.mulf %65, %69 : vector<16x16xf32>
    %71 = arith.truncf %70 : vector<16x16xf32> to vector<16x16xbf16>
    %cst_24 = arith.constant dense<0.000000e+00> : vector<16x128xf32>
    %72 = tpu.matmul %71, %57, %cst_24 {dimension_numbers = #tpu.dot_dimension_numbers<[1], [0], [0], [1], [0, 0, 1, 1], [], []>} : vector<16x16xbf16>, vector<16x128xbf16>, vector<16x128xf32> -> vector<16x128xf32>
    %73 = arith.truncf %72 : vector<16x128xf32> to vector<16x128xbf16>
    %c0_25 = arith.constant 0 : index
    %c128 = arith.constant 128 : index
    %74 = vector.load %arg7[%c0_25, %c128] : memref<16x256xbf16, #tpu.memory_space<vmem>>, vector<16x128xbf16>
    tpu.vector_store %arg7[%c0_25, %c128], %73 {strides = array<i32>} : memref<16x256xbf16, #tpu.memory_space<vmem>>, vector<16x128xbf16>,
    %c0_26 = arith.constant 0 : index
    %c0_27 = arith.constant 0 : index
    %75 = vector.load %arg7[%c0_26, %c0_27] : memref<16x256xbf16, #tpu.memory_space<vmem>>, vector<16x256xbf16>
    %c0_28 = arith.constant 0 : index
    %c0_29 = arith.constant 0 : index
    %76 = vector.load %arg5[%c0_28, %c0_29] : memref<256x256xbf16, #tpu.memory_space<vmem>>, vector<256x256xbf16>
    %cst_30 = arith.constant dense<0.000000e+00> : vector<16x256xf32>
    %77 = tpu.matmul %75, %76, %cst_30 {dimension_numbers = #tpu.dot_dimension_numbers<[1], [0], [0], [1], [0, 0, 1, 1], [], []>} : vector<16x256xbf16>, vector<256x256xbf16>, vector<16x256xf32> -> vector<16x256xf32>
    %78 = arith.truncf %77 : vector<16x256xf32> to vector<16x256xbf16>
    %c0_31 = arith.constant 0 : index
    %c0_32 = arith.constant 0 : index
    %79 = vector.load %arg6[%c0_31, %c0_32] : memref<16x256xbf16, #tpu.memory_space<vmem>>, vector<16x256xbf16>
    tpu.vector_store %arg6[%c0_31, %c0_32], %78 {strides = array<i32>} : memref<16x256xbf16, #tpu.memory_space<vmem>>, vector<16x256xbf16>,
    return
  }
  func.func @transform_0(%arg0: i32) -> (i32, i32, i32) {
    %c0_i32 = arith.constant 0 : i32
    %c0_i32_0 = arith.constant 0 : i32
    %c0_i32_1 = arith.constant 0 : i32
    %c0_i32_2 = arith.constant 0 : i32
    return %c0_i32, %c0_i32_0, %c0_i32_1 : i32, i32, i32
  }
  func.func @transform_1(%arg0: i32) -> (i32, i32) {
    %c0_i32 = arith.constant 0 : i32
    %c0_i32_0 = arith.constant 0 : i32
    %c0_i32_1 = arith.constant 0 : i32
    return %c0_i32, %c0_i32_0 : i32, i32
  }
  func.func @transform_2(%arg0: i32) -> (i32, i32) {
    %c0_i32 = arith.constant 0 : i32
    %c0_i32_0 = arith.constant 0 : i32
    %c0_i32_1 = arith.constant 0 : i32
    return %c0_i32, %c0_i32_0 : i32, i32
  }
  func.func @transform_3(%arg0: i32) -> (i32, i32) {
    %c0_i32 = arith.constant 0 : i32
    %c0_i32_0 = arith.constant 0 : i32
    %c0_i32_1 = arith.constant 0 : i32
    return %c0_i32, %c0_i32_0 : i32, i32
  }
  func.func @transform_4(%arg0: i32) -> (i32, i32) {
    %c0_i32 = arith.constant 0 : i32
    %c0_i32_0 = arith.constant 0 : i32
    %c0_i32_1 = arith.constant 0 : i32
    return %c0_i32, %c0_i32_0 : i32, i32
  }
  func.func @transform_5(%arg0: i32) -> (i32, i32) {
    %c0_i32 = arith.constant 0 : i32
    %c0_i32_0 = arith.constant 0 : i32
    %c0_i32_1 = arith.constant 0 : i32
    return %c0_i32, %c0_i32_0 : i32, i32
  }
}

</mosaic_0001>

<llo_original>
// kernel: tpu_custom_call.1
$region0: #{tpu_custom_call.1}
  #allocation0 [shape = 'u32[]', space=smem, size = 0x4, offset = 0x4, fixed_abs, tag = 'smem constant byte address 0x4 - core index']
  #allocation1 [shape = 'u32[144,128]{1,0:T(1,128)}', space=vmem, size = 0x12000, scoped, tag = 'internal scratch']
  #allocation2 [shape = 'bf16[16,256]{1,0:T(16,128)(2,1)}', space=vmem, size = 0x2000, scoped, tag = 'scratch operand']
  %s0 = inlined_call_operand.hbm [shape: f32[2,16,256], index: 0, kind: input, shape index: {}]
  %s1 = inlined_call_operand.vmem [shape: f32[1,256], index: 1, kind: input, shape index: {}]
  %s2 = inlined_call_operand.vmem [shape: f32[1,256], index: 2, kind: input, shape index: {}]
  %s3 = inlined_call_operand.hbm [shape: bf16[256,768], index: 3, kind: input, shape index: {}]
  %s4 = inlined_call_operand.hbm [shape: bf16[256,256], index: 4, kind: input, shape index: {}]
  %s5 = inlined_call_operand.hbm [shape: bf16[16,256], index: 5, kind: output, shape index: {}]
  %s6 = sld [smem:[#allocation0]]
  $region42: #{tpu_custom_call.1} parent=0
    _
  %s8 = ssub.s32 1, %s6
  %s9 = scalar_select 0, %s8, %s6
  $region1: #{tpu_custom_call.1} parent=0
    #allocation3 [shape = 'u8[16384]{0}', space=vmem, size = 0x4000, scoped, tag = 'input window, operand 0, single buffered']
    #allocation4 [shape = 's32[1]{0}', space=sflag, size = 0x4, scoped, tag = 'scoped memory for tpu_custom_call.1']
    #allocation5 [shape = 's32[1]{0}', space=sflag, size = 0x4, scoped, tag = 'scoped memory for tpu_custom_call.1']
    #allocation6 [shape = 'u8[393216]{0}', space=vmem, size = 0x60000, scoped, tag = 'input window, operand 3, single buffered']
    #allocation7 [shape = 's32[1]{0}', space=sflag, size = 0x4, scoped, tag = 'scoped memory for tpu_custom_call.1']
    #allocation8 [shape = 'u8[131072]{0}', space=vmem, size = 0x20000, scoped, tag = 'input window, operand 4, single buffered']
    #allocation9 [shape = 'u8[8192]{0}', space=vmem, size = 0x2000, scoped, tag = 'output window, operand 0, single buffered']
    %10 = vsyncpa [#allocation4], 0
    %11 = vsyncpa [#allocation7], 0
    %12 = vsyncpa [#allocation5], 0
    // Predicated region
    $region2: #{tpu_custom_call.1} parent=1 // pred_check
      _
    $region3: #{tpu_custom_call.1} parent=1 // pred_check_branch
      %14 = sbr.rel (0) target = $region5
    $region4: #{tpu_custom_call.1} parent=1 // pred_region
      %s16 = ssub.s32 512, 512
      %17 = vsyncadd [#allocation4], %s16
      %s18 = sshll.u32 [#allocation3], 4
      %s19 = int_to_ptr.vmem [resolvable:$true] %s18
      %24 = dma.hbm_to_vmem [thread:$0]  %s0, 512, %s19, [#allocation4], 256, 256, 16
    $region5: #{tpu_custom_call.1} parent=1 // pred_fallthru
      _
    // Predicated region
    $region6: #{tpu_custom_call.1} parent=1 // pred_check
      _
    $region7: #{tpu_custom_call.1} parent=1 // pred_check_branch
      %26 = sbr.rel (0) target = $region9
    $region8: #{tpu_custom_call.1} parent=1 // pred_region
      _
    $region9: #{tpu_custom_call.1} parent=1 // pred_fallthru
      _
    // Predicated region
    $region10: #{tpu_custom_call.1} parent=1 // pred_check
      _
    $region11: #{tpu_custom_call.1} parent=1 // pred_check_branch
      %28 = sbr.rel (0) target = $region13
    $region12: #{tpu_custom_call.1} parent=1 // pred_region
      _
    $region13: #{tpu_custom_call.1} parent=1 // pred_fallthru
      _
    // Predicated region
    $region14: #{tpu_custom_call.1} parent=1 // pred_check
      _
    $region15: #{tpu_custom_call.1} parent=1 // pred_check_branch
      %30 = sbr.rel (0) target = $region17
    $region16: #{tpu_custom_call.1} parent=1 // pred_region
      %s32 = ssub.s32 12288, 12288
      %33 = vsyncadd [#allocation7], %s32
      %s34 = sshll.u32 [#allocation6], 4
      %s35 = int_to_ptr.vmem [resolvable:$true] %s34
      %40 = dma.hbm_to_vmem [thread:$0]  %s3, 12288, %s35, [#allocation7], 384, 384, 24
    $region17: #{tpu_custom_call.1} parent=1 // pred_fallthru
      _
    // Predicated region
    $region18: #{tpu_custom_call.1} parent=1 // pred_check
      _
    $region19: #{tpu_custom_call.1} parent=1 // pred_check_branch
      %42 = sbr.rel (0) target = $region21
    $region20: #{tpu_custom_call.1} parent=1 // pred_region
      %s44 = ssub.s32 4096, 4096
      %45 = vsyncadd [#allocation7], %s44
      %s46 = sshll.u32 [#allocation8], 4
      %s47 = int_to_ptr.vmem [resolvable:$true] %s46
      %52 = dma.hbm_to_vmem [thread:$0]  %s4, 4096, %s47, [#allocation7], 128, 128, 8
    $region21: #{tpu_custom_call.1} parent=1 // pred_fallthru
      _
    // Predicated region
    $region22: #{tpu_custom_call.1} parent=1 // pred_check
      _
    $region23: #{tpu_custom_call.1} parent=1 // pred_check_branch
      %54 = sbr.rel (0) target = $region25
    $region24: #{tpu_custom_call.1} parent=1 // pred_region
      %55 = dma.done [#allocation4], 512
    $region25: #{tpu_custom_call.1} parent=1 // pred_fallthru
      _
    // Predicated region
    $region26: #{tpu_custom_call.1} parent=1 // pred_check
      _
    $region27: #{tpu_custom_call.1} parent=1 // pred_check_branch
      %57 = sbr.rel (0) target = $region29
    $region28: #{tpu_custom_call.1} parent=1 // pred_region
      %58 = dma.done [#allocation7], 12288
    $region29: #{tpu_custom_call.1} parent=1 // pred_fallthru
      _
    // Predicated region
    $region30: #{tpu_custom_call.1} parent=1 // pred_check
      _
    $region31: #{tpu_custom_call.1} parent=1 // pred_check_branch
      %60 = sbr.rel (0) target = $region33
    $region32: #{tpu_custom_call.1} parent=1 // pred_region
      %61 = dma.done [#allocation7], 4096
    $region33: #{tpu_custom_call.1} parent=1 // pred_fallthru
      _
    %v63 = vld [vmem:[#allocation3] sm:$0xff]
    %v64 = vld [vmem:[#allocation3 + $0x8] sm:$0xff]
    %v65 = vld [vmem:[#allocation3 + $0x10] sm:$0xff]
    %v66 = vld [vmem:[#allocation3 + $0x18] sm:$0xff]
    %v67 = vld [vmem:[%s1] sm:$0x3]
    %v68 = vld [vmem:[%s2] sm:$0x3]
    %v69 = vadd.f32 %v63, %v64
    %70 = vadd.xlane.f32.xlu0 %v69
    %v71 = vpop.xlane.xlu0 %70
    %v72 = vadd.f32 %v65, %v66
    %73 = vadd.xlane.f32.xlu0 %v72
    %v74 = vpop.xlane.xlu0 %73
    %v75 = vrcp.pop 256.0
    %v76 = vmul.f32 %v71, %v75
    %v77 = vmul.f32 %v74, %v75
    %v78 = vsub.f32 %v63, %v76
    %v79 = vsub.f32 %v64, %v76
    %v80 = vsub.f32 %v65, %v77
    %v81 = vsub.f32 %v66, %v77
    %v82 = vmul.f32 %v78, %v78
    %v83 = vmul.f32 %v79, %v79
    %v84 = vmul.f32 %v80, %v80
    %v85 = vmul.f32 %v81, %v81
    %v86 = vadd.f32 %v82, %v83
    %87 = vadd.xlane.f32.xlu0 %v86
    %v88 = vpop.xlane.xlu0 %87
    %v89 = vadd.f32 %v84, %v85
    %90 = vadd.xlane.f32.xlu0 %v89
    %v91 = vpop.xlane.xlu0 %90
    %v92 = vmul.f32 %v88, %v75
    %v93 = vmul.f32 %v91, %v75
    %v94 = vadd.f32 %v92, 1e-05
    %v95 = vadd.f32 %v93, 1e-05
    %v96 = vrsqrt.pop %v94
    %v97 = vrsqrt.pop %v95
    %v98 = vmul.f32 %v78, %v96
    %v99 = vmul.f32 %v79, %v96
    %v100 = vmul.f32 %v80, %v97
    %v101 = vmul.f32 %v81, %v97
    %v103 = vlaneseq
    %v104 = vshrl.u32 %v103, 7
    %v105 = vsub.s32 0, %v104
    %v106 = vrot.slane %v67, %v105
    %v107 = vlaneseq
    %v108 = vshrl.u32 %v107, 7
    %v109 = vsub.s32 1, %v108
    %v110 = vrot.slane %v67, %v109
    %v113 = vmul.f32 %v98, %v106
    %v114 = vmul.f32 %v99, %v110
    %v115 = vmul.f32 %v100, %v106
    %v116 = vmul.f32 %v101, %v110
    %v118 = vlaneseq
    %v119 = vshrl.u32 %v118, 7
    %v120 = vsub.s32 0, %v119
    %v121 = vrot.slane %v68, %v120
    %v122 = vlaneseq
    %v123 = vshrl.u32 %v122, 7
    %v124 = vsub.s32 1, %v123
    %v125 = vrot.slane %v68, %v124
    %v128 = vadd.f32 %v113, %v121
    %v129 = vadd.f32 %v114, %v125
    %v130 = vadd.f32 %v115, %v121
    %v131 = vadd.f32 %v116, %v125
    %v132 = vpack.c.bf16 %v130, %v128
    %v133 = vpack.c.bf16 %v131, %v129
    %v134 = vld [vmem:[#allocation6] sm:$0xff]
    %v135 = vld [vmem:[#allocation6 + $0x8] sm:$0xff]
    %v136 = vld [vmem:[#allocation6 + $0x10] sm:$0xff]
    %v137 = vld [vmem:[#allocation6 + $0x18] sm:$0xff]
    %v138 = vld [vmem:[#allocation6 + $0x20] sm:$0xff]
    %v139 = vld [vmem:[#allocation6 + $0x28] sm:$0xff]
    %v140 = vld [vmem:[#allocation6 + $0x30] sm:$0xff]
    %v141 = vld [vmem:[#allocation6 + $0x38] sm:$0xff]
    %v142 = vld [vmem:[#allocation6 + $0x40] sm:$0xff]
    %v143 = vld [vmem:[#allocation6 + $0x48] sm:$0xff]
    %v144 = vld [vmem:[#allocation6 + $0x50] sm:$0xff]
    %v145 = vld [vmem:[#allocation6 + $0x58] sm:$0xff]
    %v146 = vld [vmem:[#allocation6 + $0x60] sm:$0xff]
    %v147 = vld [vmem:[#allocation6 + $0x68] sm:$0xff]
    %v148 = vld [vmem:[#allocation6 + $0x70] sm:$0xff]
    %v149 = vld [vmem:[#allocation6 + $0x78] sm:$0xff]
    %v150 = vld [vmem:[#allocation6 + $0x80] sm:$0xff]
    %v151 = vld [vmem:[#allocation6 + $0x88] sm:$0xff]
    %v152 = vld [vmem:[#allocation6 + $0x90] sm:$0xff]
    %v153 = vld [vmem:[#allocation6 + $0x98] sm:$0xff]
    %v154 = vld [vmem:[#allocation6 + $0xa0] sm:$0xff]
    %v155 = vld [vmem:[#allocation6 + $0xa8] sm:$0xff]
    %v156 = vld [vmem:[#allocation6 + $0xb0] sm:$0xff]
    %v157 = vld [vmem:[#allocation6 + $0xb8] sm:$0xff]
    %v158 = vld [vmem:[#allocation6 + $0xc0] sm:$0xff]
    %v159 = vld [vmem:[#allocation6 + $0xc8] sm:$0xff]
    %v160 = vld [vmem:[#allocation6 + $0xd0] sm:$0xff]
    %v161 = vld [vmem:[#allocation6 + $0xd8] sm:$0xff]
    %v162 = vld [vmem:[#allocation6 + $0xe0] sm:$0xff]
    %v163 = vld [vmem:[#allocation6 + $0xe8] sm:$0xff]
    %v164 = vld [vmem:[#allocation6 + $0xf0] sm:$0xff]
    %v165 = vld [vmem:[#allocation6 + $0xf8] sm:$0xff]
    %v166 = vld [vmem:[#allocation6 + $0x100] sm:$0xff]
    %v167 = vld [vmem:[#allocation6 + $0x108] sm:$0xff]
    %v168 = vld [vmem:[#allocation6 + $0x110] sm:$0xff]
    %v169 = vld [vmem:[#allocation6 + $0x118] sm:$0xff]
    %v170 = vld [vmem:[#allocation6 + $0x120] sm:$0xff]
    %v171 = vld [vmem:[#allocation6 + $0x128] sm:$0xff]
    %v172 = vld [vmem:[#allocation6 + $0x130] sm:$0xff]
    %v173 = vld [vmem:[#allocation6 + $0x138] sm:$0xff]
    %v174 = vld [vmem:[#allocation6 + $0x140] sm:$0xff]
    %v175 = vld [vmem:[#allocation6 + $0x148] sm:$0xff]
    %v176 = vld [vmem:[#allocation6 + $0x150] sm:$0xff]
    %v177 = vld [vmem:[#allocation6 + $0x158] sm:$0xff]
    %v178 = vld [vmem:[#allocation6 + $0x160] sm:$0xff]
    %v179 = vld [vmem:[#allocation6 + $0x168] sm:$0xff]
    %v180 = vld [vmem:[#allocation6 + $0x170] sm:$0xff]
    %v181 = vld [vmem:[#allocation6 + $0x178] sm:$0xff]
    %v182 = vld [vmem:[#allocation6 + $0x180] sm:$0xff]
    %v183 = vld [vmem:[#allocation6 + $0x188] sm:$0xff]
    %v184 = vld [vmem:[#allocation6 + $0x190] sm:$0xff]
    %v185 = vld [vmem:[#allocation6 + $0x198] sm:$0xff]
    %v186 = vld [vmem:[#allocation6 + $0x1a0] sm:$0xff]
    %v187 = vld [vmem:[#allocation6 + $0x1a8] sm:$0xff]
    %v188 = vld [vmem:[#allocation6 + $0x1b0] sm:$0xff]
    %v189 = vld [vmem:[#allocation6 + $0x1b8] sm:$0xff]
    %v190 = vld [vmem:[#allocation6 + $0x1c0] sm:$0xff]
    %v191 = vld [vmem:[#allocation6 + $0x1c8] sm:$0xff]
    %v192 = vld [vmem:[#allocation6 + $0x1d0] sm:$0xff]
    %v193 = vld [vmem:[#allocation6 + $0x1d8] sm:$0xff]
    %v194 = vld [vmem:[#allocation6 + $0x1e0] sm:$0xff]
    %v195 = vld [vmem:[#allocation6 + $0x1e8] sm:$0xff]
    %v196 = vld [vmem:[#allocation6 + $0x1f0] sm:$0xff]
    %v197 = vld [vmem:[#allocation6 + $0x1f8] sm:$0xff]
    %v198 = vld [vmem:[#allocation6 + $0x200] sm:$0xff]
    %v199 = vld [vmem:[#allocation6 + $0x208] sm:$0xff]
    %v200 = vld [vmem:[#allocation6 + $0x210] sm:$0xff]
    %v201 = vld [vmem:[#allocation6 + $0x218] sm:$0xff]
    %v202 = vld [vmem:[#allocation6 + $0x220] sm:$0xff]
    %v203 = vld [vmem:[#allocation6 + $0x228] sm:$0xff]
    %v204 = vld [vmem:[#allocation6 + $0x230] sm:$0xff]
    %v205 = vld [vmem:[#allocation6 + $0x238] sm:$0xff]
    %v206 = vld [vmem:[#allocation6 + $0x240] sm:$0xff]
    %v207 = vld [vmem:[#allocation6 + $0x248] sm:$0xff]
    %v208 = vld [vmem:[#allocation6 + $0x250] sm:$0xff]
    %v209 = vld [vmem:[#allocation6 + $0x258] sm:$0xff]
    %v210 = vld [vmem:[#allocation6 + $0x260] sm:$0xff]
    %v211 = vld [vmem:[#allocation6 + $0x268] sm:$0xff]
    %v212 = vld [vmem:[#allocation6 + $0x270] sm:$0xff]
    %v213 = vld [vmem:[#allocation6 + $0x278] sm:$0xff]
    %v214 = vld [vmem:[#allocation6 + $0x280] sm:$0xff]
    %v215 = vld [vmem:[#allocation6 + $0x288] sm:$0xff]
    %v216 = vld [vmem:[#allocation6 + $0x290] sm:$0xff]
    %v217 = vld [vmem:[#allocation6 + $0x298] sm:$0xff]
    %v218 = vld [vmem:[#allocation6 + $0x2a0] sm:$0xff]
    %v219 = vld [vmem:[#allocation6 + $0x2a8] sm:$0xff]
    %v220 = vld [vmem:[#allocation6 + $0x2b0] sm:$0xff]
    %v221 = vld [vmem:[#allocation6 + $0x2b8] sm:$0xff]
    %v222 = vld [vmem:[#allocation6 + $0x2c0] sm:$0xff]
    %v223 = vld [vmem:[#allocation6 + $0x2c8] sm:$0xff]
    %v224 = vld [vmem:[#allocation6 + $0x2d0] sm:$0xff]
    %v225 = vld [vmem:[#allocation6 + $0x2d8] sm:$0xff]
    %v226 = vld [vmem:[#allocation6 + $0x2e0] sm:$0xff]
    %v227 = vld [vmem:[#allocation6 + $0x2e8] sm:$0xff]
    %v228 = vld [vmem:[#allocation6 + $0x2f0] sm:$0xff]
    %v229 = vld [vmem:[#allocation6 + $0x2f8] sm:$0xff]
    %v326 = vunpack.c.l.b16 %v134
    %v327 = vunpack.c.h.b16 %v134
    %v328 = vunpack.c.l.b16 %v135
    %v329 = vunpack.c.h.b16 %v135
    %v330 = vunpack.c.l.b16 %v136
    %v331 = vunpack.c.h.b16 %v136
    %v332 = vunpack.c.l.b16 %v137
    %v333 = vunpack.c.h.b16 %v137
    %v334 = vunpack.c.l.b16 %v138
    %v335 = vunpack.c.h.b16 %v138
    %v336 = vunpack.c.l.b16 %v139
    %v337 = vunpack.c.h.b16 %v139
    %v338 = vunpack.c.l.b16 %v140
    %v339 = vunpack.c.h.b16 %v140
    %v340 = vunpack.c.l.b16 %v141
    %v341 = vunpack.c.h.b16 %v141
    %v342 = vunpack.c.l.b16 %v142
    %v343 = vunpack.c.h.b16 %v142
    %v344 = vunpack.c.l.b16 %v143
    %v345 = vunpack.c.h.b16 %v143
    %v346 = vunpack.c.l.b16 %v144
    %v347 = vunpack.c.h.b16 %v144
    %v348 = vunpack.c.l.b16 %v145
    %v349 = vunpack.c.h.b16 %v145
    %v350 = vunpack.c.l.b16 %v146
    %v351 = vunpack.c.h.b16 %v146
    %v352 = vunpack.c.l.b16 %v147
    %v353 = vunpack.c.h.b16 %v147
    %v354 = vunpack.c.l.b16 %v148
    %v355 = vunpack.c.h.b16 %v148
    %v356 = vunpack.c.l.b16 %v149
    %v357 = vunpack.c.h.b16 %v149
    %v358 = vunpack.c.l.b16 %v150
    %v359 = vunpack.c.h.b16 %v150
    %v360 = vunpack.c.l.b16 %v151
    %v361 = vunpack.c.h.b16 %v151
    %v362 = vunpack.c.l.b16 %v152
    %v363 = vunpack.c.h.b16 %v152
    %v364 = vunpack.c.l.b16 %v153
    %v365 = vunpack.c.h.b16 %v153
    %v366 = vunpack.c.l.b16 %v154
    %v367 = vunpack.c.h.b16 %v154
    %v368 = vunpack.c.l.b16 %v155
    %v369 = vunpack.c.h.b16 %v155
    %v370 = vunpack.c.l.b16 %v156
    %v371 = vunpack.c.h.b16 %v156
    %v372 = vunpack.c.l.b16 %v157
    %v373 = vunpack.c.h.b16 %v157
    %v374 = vunpack.c.l.b16 %v158
    %v375 = vunpack.c.h.b16 %v158
    %v376 = vunpack.c.l.b16 %v159
    %v377 = vunpack.c.h.b16 %v159
    %v378 = vunpack.c.l.b16 %v160
    %v379 = vunpack.c.h.b16 %v160
    %v380 = vunpack.c.l.b16 %v161
    %v381 = vunpack.c.h.b16 %v161
    %v382 = vunpack.c.l.b16 %v162
    %v383 = vunpack.c.h.b16 %v162
    %v384 = vunpack.c.l.b16 %v163
    %v385 = vunpack.c.h.b16 %v163
    %v386 = vunpack.c.l.b16 %v164
    %v387 = vunpack.c.h.b16 %v164
    %v388 = vunpack.c.l.b16 %v165
    %v389 = vunpack.c.h.b16 %v165
    %v390 = vunpack.c.l.b16 %v166
    %v391 = vunpack.c.h.b16 %v166
    %v392 = vunpack.c.l.b16 %v167
    %v393 = vunpack.c.h.b16 %v167
    %v394 = vunpack.c.l.b16 %v168
    %v395 = vunpack.c.h.b16 %v168
    %v396 = vunpack.c.l.b16 %v169
    %v397 = vunpack.c.h.b16 %v169
    %v398 = vunpack.c.l.b16 %v170
    %v399 = vunpack.c.h.b16 %v170
    %v400 = vunpack.c.l.b16 %v171
    %v401 = vunpack.c.h.b16 %v171
    %v402 = vunpack.c.l.b16 %v172
    %v403 = vunpack.c.h.b16 %v172
    %v404 = vunpack.c.l.b16 %v173
    %v405 = vunpack.c.h.b16 %v173
    %v406 = vunpack.c.l.b16 %v174
    %v407 = vunpack.c.h.b16 %v174
    %v408 = vunpack.c.l.b16 %v175
    %v409 = vunpack.c.h.b16 %v175
    %v410 = vunpack.c.l.b16 %v176
    %v411 = vunpack.c.h.b16 %v176
    %v412 = vunpack.c.l.b16 %v177
    %v413 = vunpack.c.h.b16 %v177
    %v414 = vunpack.c.l.b16 %v178
    %v415 = vunpack.c.h.b16 %v178
    %v416 = vunpack.c.l.b16 %v179
    %v417 = vunpack.c.h.b16 %v179
    %v418 = vunpack.c.l.b16 %v180
    %v419 = vunpack.c.h.b16 %v180
    %v420 = vunpack.c.l.b16 %v181
    %v421 = vunpack.c.h.b16 %v181
    %v422 = vunpack.c.l.b16 %v182
    %v423 = vunpack.c.h.b16 %v182
    %v424 = vunpack.c.l.b16 %v183
    %v425 = vunpack.c.h.b16 %v183
    %v426 = vunpack.c.l.b16 %v184
    %v427 = vunpack.c.h.b16 %v184
    %v428 = vunpack.c.l.b16 %v185
    %v429 = vunpack.c.h.b16 %v185
    %v430 = vunpack.c.l.b16 %v186
    %v431 = vunpack.c.h.b16 %v186
    %v432 = vunpack.c.l.b16 %v187
    %v433 = vunpack.c.h.b16 %v187
    %v434 = vunpack.c.l.b16 %v188
    %v435 = vunpack.c.h.b16 %v188
    %v436 = vunpack.c.l.b16 %v189
    %v437 = vunpack.c.h.b16 %v189
    %v438 = vunpack.c.l.b16 %v190
    %v439 = vunpack.c.h.b16 %v190
    %v440 = vunpack.c.l.b16 %v191
    %v441 = vunpack.c.h.b16 %v191
    %v442 = vunpack.c.l.b16 %v192
    %v443 = vunpack.c.h.b16 %v192
    %v444 = vunpack.c.l.b16 %v193
    %v445 = vunpack.c.h.b16 %v193
    %v446 = vunpack.c.l.b16 %v194
    %v447 = vunpack.c.h.b16 %v194
    %v448 = vunpack.c.l.b16 %v195
    %v449 = vunpack.c.h.b16 %v195
    %v450 = vunpack.c.l.b16 %v196
    %v451 = vunpack.c.h.b16 %v196
    %v452 = vunpack.c.l.b16 %v197
    %v453 = vunpack.c.h.b16 %v197
    %v454 = vunpack.c.l.b16 %v198
    %v455 = vunpack.c.h.b16 %v198
    %v456 = vunpack.c.l.b16 %v199
    %v457 = vunpack.c.h.b16 %v199
    %v458 = vunpack.c.l.b16 %v200
    %v459 = vunpack.c.h.b16 %v200
    %v460 = vunpack.c.l.b16 %v201
    %v461 = vunpack.c.h.b16 %v201
    %v462 = vunpack.c.l.b16 %v202
    %v463 = vunpack.c.h.b16 %v202
    %v464 = vunpack.c.l.b16 %v203
    %v465 = vunpack.c.h.b16 %v203
    %v466 = vunpack.c.l.b16 %v204
    %v467 = vunpack.c.h.b16 %v204
    %v468 = vunpack.c.l.b16 %v205
    %v469 = vunpack.c.h.b16 %v205
    %v470 = vunpack.c.l.b16 %v206
    %v471 = vunpack.c.h.b16 %v206
    %v472 = vunpack.c.l.b16 %v207
    %v473 = vunpack.c.h.b16 %v207
    %v474 = vunpack.c.l.b16 %v208
    %v475 = vunpack.c.h.b16 %v208
    %v476 = vunpack.c.l.b16 %v209
    %v477 = vunpack.c.h.b16 %v209
    %v478 = vunpack.c.l.b16 %v210
    %v479 = vunpack.c.h.b16 %v210
    %v480 = vunpack.c.l.b16 %v211
    %v481 = vunpack.c.h.b16 %v211
    %v482 = vunpack.c.l.b16 %v212
    %v483 = vunpack.c.h.b16 %v212
    %v484 = vunpack.c.l.b16 %v213
    %v485 = vunpack.c.h.b16 %v213
    %v486 = vunpack.c.l.b16 %v214
    %v487 = vunpack.c.h.b16 %v214
    %v488 = vunpack.c.l.b16 %v215
    %v489 = vunpack.c.h.b16 %v215
    %v490 = vunpack.c.l.b16 %v216
    %v491 = vunpack.c.h.b16 %v216
    %v492 = vunpack.c.l.b16 %v217
    %v493 = vunpack.c.h.b16 %v217
    %v494 = vunpack.c.l.b16 %v218
    %v495 = vunpack.c.h.b16 %v218
    %v496 = vunpack.c.l.b16 %v219
    %v497 = vunpack.c.h.b16 %v219
    %v498 = vunpack.c.l.b16 %v220
    %v499 = vunpack.c.h.b16 %v220
    %v500 = vunpack.c.l.b16 %v221
    %v501 = vunpack.c.h.b16 %v221
    %v502 = vunpack.c.l.b16 %v222
    %v503 = vunpack.c.h.b16 %v222
    %v504 = vunpack.c.l.b16 %v223
    %v505 = vunpack.c.h.b16 %v223
    %v506 = vunpack.c.l.b16 %v224
    %v507 = vunpack.c.h.b16 %v224
    %v508 = vunpack.c.l.b16 %v225
    %v509 = vunpack.c.h.b16 %v225
    %v510 = vunpack.c.l.b16 %v226
    %v511 = vunpack.c.h.b16 %v226
    %v512 = vunpack.c.l.b16 %v227
    %v513 = vunpack.c.h.b16 %v227
    %v514 = vunpack.c.l.b16 %v228
    %v515 = vunpack.c.h.b16 %v228
    %v516 = vunpack.c.l.b16 %v229
    %v517 = vunpack.c.h.b16 %v229
    %v518 = vpack.c.b16 %v332, %v326
    %v519 = vpack.c.b16 %v333, %v327
    %v520 = vpack.c.b16 %v334, %v328
    %v521 = vpack.c.b16 %v335, %v329
    %v522 = vpack.c.b16 %v336, %v330
    %v523 = vpack.c.b16 %v337, %v331
    %v524 = vpack.c.b16 %v344, %v338
    %v525 = vpack.c.b16 %v345, %v339
    %v526 = vpack.c.b16 %v346, %v340
    %v527 = vpack.c.b16 %v347, %v341
    %v528 = vpack.c.b16 %v348, %v342
    %v529 = vpack.c.b16 %v349, %v343
    %v530 = vpack.c.b16 %v356, %v350
    %v531 = vpack.c.b16 %v357, %v351
    %v532 = vpack.c.b16 %v358, %v352
    %v533 = vpack.c.b16 %v359, %v353
    %v534 = vpack.c.b16 %v360, %v354
    %v535 = vpack.c.b16 %v361, %v355
    %v536 = vpack.c.b16 %v368, %v362
    %v537 = vpack.c.b16 %v369, %v363
    %v538 = vpack.c.b16 %v370, %v364
    %v539 = vpack.c.b16 %v371, %v365
    %v540 = vpack.c.b16 %v372, %v366
    %v541 = vpack.c.b16 %v373, %v367
    %v542 = vpack.c.b16 %v380, %v374
    %v543 = vpack.c.b16 %v381, %v375
    %v544 = vpack.c.b16 %v382, %v376
    %v545 = vpack.c.b16 %v383, %v377
    %v546 = vpack.c.b16 %v384, %v378
    %v547 = vpack.c.b16 %v385, %v379
    %v548 = vpack.c.b16 %v392, %v386
    %v549 = vpack.c.b16 %v393, %v387
    %v550 = vpack.c.b16 %v394, %v388
    %v551 = vpack.c.b16 %v395, %v389
    %v552 = vpack.c.b16 %v396, %v390
    %v553 = vpack.c.b16 %v397, %v391
    %v554 = vpack.c.b16 %v404, %v398
    %v555 = vpack.c.b16 %v405, %v399
    %v556 = vpack.c.b16 %v406, %v400
    %v557 = vpack.c.b16 %v407, %v401
    %v558 = vpack.c.b16 %v408, %v402
    %v559 = vpack.c.b16 %v409, %v403
    %v560 = vpack.c.b16 %v416, %v410
    %v561 = vpack.c.b16 %v417, %v411
    %v562 = vpack.c.b16 %v418, %v412
    %v563 = vpack.c.b16 %v419, %v413
    %v564 = vpack.c.b16 %v420, %v414
    %v565 = vpack.c.b16 %v421, %v415
    %v566 = vpack.c.b16 %v428, %v422
    %v567 = vpack.c.b16 %v429, %v423
    %v568 = vpack.c.b16 %v430, %v424
    %v569 = vpack.c.b16 %v431, %v425
    %v570 = vpack.c.b16 %v432, %v426
    %v571 = vpack.c.b16 %v433, %v427
    %v572 = vpack.c.b16 %v440, %v434
    %v573 = vpack.c.b16 %v441, %v435
    %v574 = vpack.c.b16 %v442, %v436
    %v575 = vpack.c.b16 %v443, %v437
    %v576 = vpack.c.b16 %v444, %v438
    %v577 = vpack.c.b16 %v445, %v439
    %v578 = vpack.c.b16 %v452, %v446
    %v579 = vpack.c.b16 %v453, %v447
    %v580 = vpack.c.b16 %v454, %v448
    %v581 = vpack.c.b16 %v455, %v449
    %v582 = vpack.c.b16 %v456, %v450
    %v583 = vpack.c.b16 %v457, %v451
    %v584 = vpack.c.b16 %v464, %v458
    %v585 = vpack.c.b16 %v465, %v459
    %v586 = vpack.c.b16 %v466, %v460
    %v587 = vpack.c.b16 %v467, %v461
    %v588 = vpack.c.b16 %v468, %v462
    %v589 = vpack.c.b16 %v469, %v463
    %v590 = vpack.c.b16 %v476, %v470
    %v591 = vpack.c.b16 %v477, %v471
    %v592 = vpack.c.b16 %v478, %v472
    %v593 = vpack.c.b16 %v479, %v473
    %v594 = vpack.c.b16 %v480, %v474
    %v595 = vpack.c.b16 %v481, %v475
    %v596 = vpack.c.b16 %v488, %v482
    %v597 = vpack.c.b16 %v489, %v483
    %v598 = vpack.c.b16 %v490, %v484
    %v599 = vpack.c.b16 %v491, %v485
    %v600 = vpack.c.b16 %v492, %v486
    %v601 = vpack.c.b16 %v493, %v487
    %v602 = vpack.c.b16 %v500, %v494
    %v603 = vpack.c.b16 %v501, %v495
    %v604 = vpack.c.b16 %v502, %v496
    %v605 = vpack.c.b16 %v503, %v497
    %v606 = vpack.c.b16 %v504, %v498
    %v607 = vpack.c.b16 %v505, %v499
    %v608 = vpack.c.b16 %v512, %v506
    %v609 = vpack.c.b16 %v513, %v507
    %v610 = vpack.c.b16 %v514, %v508
    %v611 = vpack.c.b16 %v515, %v509
    %v612 = vpack.c.b16 %v516, %v510
    %v613 = vpack.c.b16 %v517, %v511
    %710 = vmatprep.subr.bf16.mxu0 %v519
    %711 = vmatpush1.bf16.msra.mxu0 %v518
    %712 = vmatprep.subr.bf16.mxu0 %v525
    %713 = vmatpush1.bf16.msra.mxu0 %v524
    %714 = vmatprep.subr.bf16.mxu0 %v531
    %715 = vmatpush1.bf16.msra.mxu0 %v530
    %716 = vmatprep.subr.bf16.mxu0 %v537
    %717 = vmatpush1.bf16.msra.mxu0 %v536
    %718 = vmatprep.subr.bf16.mxu0 %v543
    %719 = vmatpush1.bf16.msra.mxu0 %v542
    %720 = vmatprep.subr.bf16.mxu0 %v549
    %721 = vmatpush1.bf16.msra.mxu0 %v548
    %722 = vmatprep.subr.bf16.mxu0 %v555
    %723 = vmatpush1.bf16.msra.mxu0 %v554
    %724 = vmatprep.subr.bf16.mxu0 %v561
    %725 = vmatpush1.bf16.msra.mxu0 %v560
    %726 = vmatprep.subr.bf16.mxu0 %v567
    %727 = vmatpush1.bf16.msra.mxu0 %v566
    %728 = vmatprep.subr.bf16.mxu0 %v573
    %729 = vmatpush1.bf16.msra.mxu0 %v572
    %730 = vmatprep.subr.bf16.mxu0 %v579
    %731 = vmatpush1.bf16.msra.mxu0 %v578
    %732 = vmatprep.subr.bf16.mxu0 %v585
    %733 = vmatpush1.bf16.msra.mxu0 %v584
    %734 = vmatprep.subr.bf16.mxu0 %v591
    %735 = vmatpush1.bf16.msra.mxu0 %v590
    %736 = vmatprep.subr.bf16.mxu0 %v597
    %737 = vmatpush1.bf16.msra.mxu0 %v596
    %738 = vmatprep.subr.bf16.mxu0 %v603
    %739 = vmatpush1.bf16.msra.mxu0 %v602
    %740 = vmatprep.subr.bf16.mxu0 %v609
    %741 = vmatpush1.bf16.msra.mxu0 %v608
    %742 = vmatprep.mubr.bf16.mxu0 %v133
    %743 = vmatmul.mubr.bf16.gmra.mrb[0].mxu0 %v132
    %v744 = vpop.f32.mrb[0].mxu0
    %v745 = vadd.f32 0.0, %v744
    %v746 = vpop.f32.mrb[0].mxu0
    %v747 = vadd.f32 0.0, %v746
    %v748 = vpop.f32.mrb[0].mxu0
    %v749 = vadd.f32 0.0, %v748
    %v750 = vpop.f32.mrb[0].mxu0
    %v751 = vadd.f32 0.0, %v750
    %752 = vdwg.mxu0
    %753 = vmatprep.subr.bf16.mxu0 %v521
    %754 = vmatpush1.bf16.msra.mxu0 %v520
    %755 = vmatprep.subr.bf16.mxu0 %v527
    %756 = vmatpush1.bf16.msra.mxu0 %v526
    %757 = vmatprep.subr.bf16.mxu0 %v533
    %758 = vmatpush1.bf16.msra.mxu0 %v532
    %759 = vmatprep.subr.bf16.mxu0 %v539
    %760 = vmatpush1.bf16.msra.mxu0 %v538
    %761 = vmatprep.subr.bf16.mxu0 %v545
    %762 = vmatpush1.bf16.msra.mxu0 %v544
    %763 = vmatprep.subr.bf16.mxu0 %v551
    %764 = vmatpush1.bf16.msra.mxu0 %v550
    %765 = vmatprep.subr.bf16.mxu0 %v557
    %766 = vmatpush1.bf16.msra.mxu0 %v556
    %767 = vmatprep.subr.bf16.mxu0 %v563
    %768 = vmatpush1.bf16.msra.mxu0 %v562
    %769 = vmatprep.subr.bf16.mxu0 %v569
    %770 = vmatpush1.bf16.msra.mxu0 %v568
    %771 = vmatprep.subr.bf16.mxu0 %v575
    %772 = vmatpush1.bf16.msra.mxu0 %v574
    %773 = vmatprep.subr.bf16.mxu0 %v581
    %774 = vmatpush1.bf16.msra.mxu0 %v580
    %775 = vmatprep.subr.bf16.mxu0 %v587
    %776 = vmatpush1.bf16.msra.mxu0 %v586
    %777 = vmatprep.subr.bf16.mxu0 %v593
    %778 = vmatpush1.bf16.msra.mxu0 %v592
    %779 = vmatprep.subr.bf16.mxu0 %v599
    %780 = vmatpush1.bf16.msra.mxu0 %v598
    %781 = vmatprep.subr.bf16.mxu0 %v605
    %782 = vmatpush1.bf16.msra.mxu0 %v604
    %783 = vmatprep.subr.bf16.mxu0 %v611
    %784 = vmatpush1.bf16.msra.mxu0 %v610
    %785 = vmatprep.mubr.bf16.mxu0 %v133
    %786 = vmatmul.mubr.bf16.gmra.mrb[0].mxu0 %v132
    %v787 = vpop.f32.mrb[0].mxu0
    %v788 = vadd.f32 0.0, %v787
    %v789 = vpop.f32.mrb[0].mxu0
    %v790 = vadd.f32 0.0, %v789
    %v791 = vpop.f32.mrb[0].mxu0
    %v792 = vadd.f32 0.0, %v791
    %v793 = vpop.f32.mrb[0].mxu0
    %v794 = vadd.f32 0.0, %v793
    %795 = vdwg.mxu0
    %796 = vmatprep.subr.bf16.mxu0 %v523
    %797 = vmatpush1.bf16.msra.mxu0 %v522
    %798 = vmatprep.subr.bf16.mxu0 %v529
    %799 = vmatpush1.bf16.msra.mxu0 %v528
    %800 = vmatprep.subr.bf16.mxu0 %v535
    %801 = vmatpush1.bf16.msra.mxu0 %v534
    %802 = vmatprep.subr.bf16.mxu0 %v541
    %803 = vmatpush1.bf16.msra.mxu0 %v540
    %804 = vmatprep.subr.bf16.mxu0 %v547
    %805 = vmatpush1.bf16.msra.mxu0 %v546
    %806 = vmatprep.subr.bf16.mxu0 %v553
    %807 = vmatpush1.bf16.msra.mxu0 %v552
    %808 = vmatprep.subr.bf16.mxu0 %v559
    %809 = vmatpush1.bf16.msra.mxu0 %v558
    %810 = vmatprep.subr.bf16.mxu0 %v565
    %811 = vmatpush1.bf16.msra.mxu0 %v564
    %812 = vmatprep.subr.bf16.mxu0 %v571
    %813 = vmatpush1.bf16.msra.mxu0 %v570
    %814 = vmatprep.subr.bf16.mxu0 %v577
    %815 = vmatpush1.bf16.msra.mxu0 %v576
    %816 = vmatprep.subr.bf16.mxu0 %v583
    %817 = vmatpush1.bf16.msra.mxu0 %v582
    %818 = vmatprep.subr.bf16.mxu0 %v589
    %819 = vmatpush1.bf16.msra.mxu0 %v588
    %820 = vmatprep.subr.bf16.mxu0 %v595
    %821 = vmatpush1.bf16.msra.mxu0 %v594
    %822 = vmatprep.subr.bf16.mxu0 %v601
    %823 = vmatpush1.bf16.msra.mxu0 %v600
    %824 = vmatprep.subr.bf16.mxu0 %v607
    %825 = vmatpush1.bf16.msra.mxu0 %v606
    %826 = vmatprep.subr.bf16.mxu0 %v613
    %827 = vmatpush1.bf16.msra.mxu0 %v612
    %828 = vmatprep.mubr.bf16.mxu0 %v133
    %829 = vmatmul.mubr.bf16.gmra.mrb[0].mxu0 %v132
    %v830 = vpop.f32.mrb[0].mxu0
    %v831 = vadd.f32 0.0, %v830
    %v832 = vpop.f32.mrb[0].mxu0
    %v833 = vadd.f32 0.0, %v832
    %v834 = vpop.f32.mrb[0].mxu0
    %v835 = vadd.f32 0.0, %v834
    %v836 = vpop.f32.mrb[0].mxu0
    %v837 = vadd.f32 0.0, %v836
    %838 = vdwg.mxu0
    %v839 = vpack.c.bf16 %v749, %v745
    %v840 = vpack.c.bf16 %v751, %v747
    %v841 = vpack.c.bf16 %v792, %v788
    %842 = vmatprep.subr.bf16.mxu0 0
    %843 = vmatpush1.bf16.xpose.msra.mxu0 %v840
    %844 = vmatprep.subr.bf16.mxu0 0
    %845 = vmatpush1.bf16.xpose.msra.mxu0 0
    %846 = vmatprep.subr.bf16.mxu0 0
    %847 = vmatpush1.bf16.xpose.msra.mxu0 0
    %848 = vmatprep.subr.bf16.mxu0 0
    %849 = vmatpush1.bf16.xpose.msra.mxu0 0
    %850 = vmatprep.subr.bf16.mxu0 0
    %851 = vmatpush1.bf16.xpose.msra.mxu0 0
    %852 = vmatprep.subr.bf16.mxu0 0
    %853 = vmatpush1.bf16.xpose.msra.mxu0 0
    %854 = vmatprep.subr.bf16.mxu0 0
    %855 = vmatpush1.bf16.xpose.msra.mxu0 0
    %856 = vmatprep.subr.bf16.mxu0 0
    %857 = vmatpush1.bf16.xpose.msra.mxu0 0
    %858 = vmatprep.subr.bf16.mxu0 0
    %859 = vmatpush1.bf16.xpose.msra.mxu0 0
    %860 = vmatprep.subr.bf16.mxu0 0
    %861 = vmatpush1.bf16.xpose.msra.mxu0 0
    %862 = vmatprep.subr.bf16.mxu0 0
    %863 = vmatpush1.bf16.xpose.msra.mxu0 0
    %864 = vmatprep.subr.bf16.mxu0 0
    %865 = vmatpush1.bf16.xpose.msra.mxu0 0
    %866 = vmatprep.subr.bf16.mxu0 0
    %867 = vmatpush1.bf16.xpose.msra.mxu0 0
    %868 = vmatprep.subr.bf16.mxu0 0
    %869 = vmatpush1.bf16.xpose.msra.mxu0 0
    %870 = vmatprep.subr.bf16.mxu0 0
    %871 = vmatpush1.bf16.xpose.msra.mxu0 0
    %872 = vmatprep.subr.bf16.mxu0 0
    %873 = vmatpush1.bf16.xpose.msra.mxu0 0
    %874 = vmatprep.mubr.bf16.mxu0 0
    %875 = vmatmul.mubr.bf16.gmra.mrb[0].mxu0 %v839
    %v876 = vpop.f32.mrb[0].mxu0
    %v877 = vadd.f32 0.0, %v876
    %v878 = vpop.f32.mrb[0].mxu0
    %v879 = vpop.f32.mrb[0].mxu0
    %v880 = vadd.f32 0.0, %v879
    %v881 = vpop.f32.mrb[0].mxu0
    %882 = vdwg.mxu0
    %v883 = vmul.f32 %v877, 0.088388346
    %v884 = vmul.f32 %v880, 0.088388346
    %vm885 = vcmask 130048
    %v886 = vsel %vm885, %v883, -inf
    %887 = vmax.xlane.f32.xlu0 %v886
    %v888 = vpop.xlane.xlu0 %887
    %v889 = vsel %vm885, %v884, -inf
    %890 = vmax.xlane.f32.xlu0 %v889
    %v891 = vpop.xlane.xlu0 %890
    %v892 = vsub.f32 %v883, %v888
    %v893 = vsub.f32 %v884, %v891
    %v894 = vmul.f32 %v892, 1.442695
    %v895 = vpow.pop %v894
    %v896 = vmul.f32 %v893, 1.442695
    %v897 = vpow.pop %v896
    %v898 = vsel %vm885, %v895, 0.0
    %899 = vadd.xlane.f32.xlu0 %v898
    %v900 = vpop.xlane.xlu0 %899
    %v901 = vsel %vm885, %v897, 0.0
    %902 = vadd.xlane.f32.xlu0 %v901
    %v903 = vpop.xlane.xlu0 %902
    %v904 = vrcp.pop %v900
    %v905 = vrcp.pop %v903
    %v906 = vmul.f32 %v895, %v904
    %v907 = vmul.f32 %v897, %v905
    %v908 = vpack.c.bf16 %v907, %v906
    %v910 = vsel %vm885, %v908, 0
    %912 = vmatprep.subr.bf16.mxu0 0
    %913 = vmatpush1.bf16.msra.mxu0 %v841
    %914 = vmatprep.subr.bf16.mxu0 0
    %915 = vmatpush1.bf16.msra.mxu0 0
    %916 = vmatprep.subr.bf16.mxu0 0
    %917 = vmatpush1.bf16.msra.mxu0 0
    %918 = vmatprep.subr.bf16.mxu0 0
    %919 = vmatpush1.bf16.msra.mxu0 0
    %920 = vmatprep.subr.bf16.mxu0 0
    %921 = vmatpush1.bf16.msra.mxu0 0
    %922 = vmatprep.subr.bf16.mxu0 0
    %923 = vmatpush1.bf16.msra.mxu0 0
    %924 = vmatprep.subr.bf16.mxu0 0
    %925 = vmatpush1.bf16.msra.mxu0 0
    %926 = vmatprep.subr.bf16.mxu0 0
    %927 = vmatpush1.bf16.msra.mxu0 0
    %928 = vmatprep.subr.bf16.mxu0 0
    %929 = vmatpush1.bf16.msra.mxu0 0
    %930 = vmatprep.subr.bf16.mxu0 0
    %931 = vmatpush1.bf16.msra.mxu0 0
    %932 = vmatprep.subr.bf16.mxu0 0
    %933 = vmatpush1.bf16.msra.mxu0 0
    %934 = vmatprep.subr.bf16.mxu0 0
    %935 = vmatpush1.bf16.msra.mxu0 0
    %936 = vmatprep.subr.bf16.mxu0 0
    %937 = vmatpush1.bf16.msra.mxu0 0
    %938 = vmatprep.subr.bf16.mxu0 0
    %939 = vmatpush1.bf16.msra.mxu0 0
    %940 = vmatprep.subr.bf16.mxu0 0
    %941 = vmatpush1.bf16.msra.mxu0 0
    %942 = vmatprep.subr.bf16.mxu0 0
    %943 = vmatpush1.bf16.msra.mxu0 0
    %944 = vmatprep.mubr.bf16.mxu0 0
    %945 = vmatmul.mubr.bf16.gmra.mrb[0].mxu0 %v910
    %v946 = vpop.f32.mrb[0].mxu0
    %v947 = vadd.f32 0.0, %v946
    %v948 = vpop.f32.mrb[0].mxu0
    %v949 = vpop.f32.mrb[0].mxu0
    %v950 = vadd.f32 0.0, %v949
    %v951 = vpop.f32.mrb[0].mxu0
    %952 = vdwg.mxu0
    %v953 = vpack.c.bf16 %v950, %v947
    %954 = vst [vmem:[#allocation2] sm:$0xff] %v953
    %v955 = vpack.c.bf16 %v794, %v790
    %v956 = vpack.c.bf16 %v835, %v831
    %v957 = vpack.c.bf16 %v837, %v833
    %958 = vmatprep.subr.bf16.mxu0 0
    %959 = vmatpush1.bf16.xpose.msra.mxu0 %v956
    %960 = vmatprep.subr.bf16.mxu0 0
    %961 = vmatpush1.bf16.xpose.msra.mxu0 0
    %962 = vmatprep.subr.bf16.mxu0 0
    %963 = vmatpush1.bf16.xpose.msra.mxu0 0
    %964 = vmatprep.subr.bf16.mxu0 0
    %965 = vmatpush1.bf16.xpose.msra.mxu0 0
    %966 = vmatprep.subr.bf16.mxu0 0
    %967 = vmatpush1.bf16.xpose.msra.mxu0 0
    %968 = vmatprep.subr.bf16.mxu0 0
    %969 = vmatpush1.bf16.xpose.msra.mxu0 0
    %970 = vmatprep.subr.bf16.mxu0 0
    %971 = vmatpush1.bf16.xpose.msra.mxu0 0
    %972 = vmatprep.subr.bf16.mxu0 0
    %973 = vmatpush1.bf16.xpose.msra.mxu0 0
    %974 = vmatprep.subr.bf16.mxu0 0
    %975 = vmatpush1.bf16.xpose.msra.mxu0 0
    %976 = vmatprep.subr.bf16.mxu0 0
    %977 = vmatpush1.bf16.xpose.msra.mxu0 0
    %978 = vmatprep.subr.bf16.mxu0 0
    %979 = vmatpush1.bf16.xpose.msra.mxu0 0
    %980 = vmatprep.subr.bf16.mxu0 0
    %981 = vmatpush1.bf16.xpose.msra.mxu0 0
    %982 = vmatprep.subr.bf16.mxu0 0
    %983 = vmatpush1.bf16.xpose.msra.mxu0 0
    %984 = vmatprep.subr.bf16.mxu0 0
    %985 = vmatpush1.bf16.xpose.msra.mxu0 0
    %986 = vmatprep.subr.bf16.mxu0 0
    %987 = vmatpush1.bf16.xpose.msra.mxu0 0
    %988 = vmatprep.subr.bf16.mxu0 0
    %989 = vmatpush1.bf16.xpose.msra.mxu0 0
    %990 = vmatprep.mubr.bf16.mxu0 0
    %991 = vmatmul.mubr.bf16.gmra.mrb[0].mxu0 %v955
    %v992 = vpop.f32.mrb[0].mxu0
    %v993 = vadd.f32 0.0, %v992
    %v994 = vpop.f32.mrb[0].mxu0
    %v995 = vpop.f32.mrb[0].mxu0
    %v996 = vadd.f32 0.0, %v995
    %v997 = vpop.f32.mrb[0].mxu0
    %998 = vdwg.mxu0
    %v999 = vmul.f32 %v993, 0.088388346
    %v1000 = vmul.f32 %v996, 0.088388346
    %v1001 = vsel %vm885, %v999, -inf
    %1002 = vmax.xlane.f32.xlu0 %v1001
    %v1003 = vpop.xlane.xlu0 %1002
    %v1004 = vsel %vm885, %v1000, -inf
    %1005 = vmax.xlane.f32.xlu0 %v1004
    %v1006 = vpop.xlane.xlu0 %1005
    %v1007 = vsub.f32 %v999, %v1003
    %v1008 = vsub.f32 %v1000, %v1006
    %v1009 = vmul.f32 %v1007, 1.442695
    %v1010 = vpow.pop %v1009
    %v1011 = vmul.f32 %v1008, 1.442695
    %v1012 = vpow.pop %v1011
    %v1013 = vsel %vm885, %v1010, 0.0
    %1014 = vadd.xlane.f32.xlu0 %v1013
    %v1015 = vpop.xlane.xlu0 %1014
    %v1016 = vsel %vm885, %v1012, 0.0
    %1017 = vadd.xlane.f32.xlu0 %v1016
    %v1018 = vpop.xlane.xlu0 %1017
    %v1019 = vrcp.pop %v1015
    %v1020 = vrcp.pop %v1018
    %v1021 = vmul.f32 %v1010, %v1019
    %v1022 = vmul.f32 %v1012, %v1020
    %v1023 = vpack.c.bf16 %v1022, %v1021
    %v1025 = vsel %vm885, %v1023, 0
    %1027 = vmatprep.subr.bf16.mxu0 0
    %1028 = vmatpush1.bf16.msra.mxu0 %v957
    %1029 = vmatprep.subr.bf16.mxu0 0
    %1030 = vmatpush1.bf16.msra.mxu0 0
    %1031 = vmatprep.subr.bf16.mxu0 0
    %1032 = vmatpush1.bf16.msra.mxu0 0
    %1033 = vmatprep.subr.bf16.mxu0 0
    %1034 = vmatpush1.bf16.msra.mxu0 0
    %1035 = vmatprep.subr.bf16.mxu0 0
    %1036 = vmatpush1.bf16.msra.mxu0 0
    %1037 = vmatprep.subr.bf16.mxu0 0
    %1038 = vmatpush1.bf16.msra.mxu0 0
    %1039 = vmatprep.subr.bf16.mxu0 0
    %1040 = vmatpush1.bf16.msra.mxu0 0
    %1041 = vmatprep.subr.bf16.mxu0 0
    %1042 = vmatpush1.bf16.msra.mxu0 0
    %1043 = vmatprep.subr.bf16.mxu0 0
    %1044 = vmatpush1.bf16.msra.mxu0 0
    %1045 = vmatprep.subr.bf16.mxu0 0
    %1046 = vmatpush1.bf16.msra.mxu0 0
    %1047 = vmatprep.subr.bf16.mxu0 0
    %1048 = vmatpush1.bf16.msra.mxu0 0
    %1049 = vmatprep.subr.bf16.mxu0 0
    %1050 = vmatpush1.bf16.msra.mxu0 0
    %1051 = vmatprep.subr.bf16.mxu0 0
    %1052 = vmatpush1.bf16.msra.mxu0 0
    %1053 = vmatprep.subr.bf16.mxu0 0
    %1054 = vmatpush1.bf16.msra.mxu0 0
    %1055 = vmatprep.subr.bf16.mxu0 0
    %1056 = vmatpush1.bf16.msra.mxu0 0
    %1057 = vmatprep.subr.bf16.mxu0 0
    %1058 = vmatpush1.bf16.msra.mxu0 0
    %1059 = vmatprep.mubr.bf16.mxu0 0
    %1060 = vmatmul.mubr.bf16.gmra.mrb[0].mxu0 %v1025
    %v1061 = vpop.f32.mrb[0].mxu0
    %v1062 = vadd.f32 0.0, %v1061
    %v1063 = vpop.f32.mrb[0].mxu0
    %v1064 = vpop.f32.mrb[0].mxu0
    %v1065 = vadd.f32 0.0, %v1064
    %v1066 = vpop.f32.mrb[0].mxu0
    %1067 = vdwg.mxu0
    %v1068 = vpack.c.bf16 %v1065, %v1062
    %1069 = vst [vmem:[#allocation2 + $0x8] sm:$0xff] %v1068
    %v1070 = vld [vmem:[#allocation2] sm:$0xff]
    %v1071 = vld [vmem:[#allocation2 + $0x8] sm:$0xff]
    %v1072 = vld [vmem:[#allocation8] sm:$0xff]
    %v1073 = vld [vmem:[#allocation8 + $0x8] sm:$0xff]
    %v1074 = vld [vmem:[#allocation8 + $0x10] sm:$0xff]
    %v1075 = vld [vmem:[#allocation8 + $0x18] sm:$0xff]
    %v1076 = vld [vmem:[#allocation8 + $0x20] sm:$0xff]
    %v1077 = vld [vmem:[#allocation8 + $0x28] sm:$0xff]
    %v1078 = vld [vmem:[#allocation8 + $0x30] sm:$0xff]
    %v1079 = vld [vmem:[#allocation8 + $0x38] sm:$0xff]
    %v1080 = vld [vmem:[#allocation8 + $0x40] sm:$0xff]
    %v1081 = vld [vmem:[#allocation8 + $0x48] sm:$0xff]
    %v1082 = vld [vmem:[#allocation8 + $0x50] sm:$0xff]
    %v1083 = vld [vmem:[#allocation8 + $0x58] sm:$0xff]
    %v1084 = vld [vmem:[#allocation8 + $0x60] sm:$0xff]
    %v1085 = vld [vmem:[#allocation8 + $0x68] sm:$0xff]
    %v1086 = vld [vmem:[#allocation8 + $0x70] sm:$0xff]
    %v1087 = vld [vmem:[#allocation8 + $0x78] sm:$0xff]
    %v1088 = vld [vmem:[#allocation8 + $0x80] sm:$0xff]
    %v1089 = vld [vmem:[#allocation8 + $0x88] sm:$0xff]
    %v1090 = vld [vmem:[#allocation8 + $0x90] sm:$0xff]
    %v1091 = vld [vmem:[#allocation8 + $0x98] sm:$0xff]
    %v1092 = vld [vmem:[#allocation8 + $0xa0] sm:$0xff]
    %v1093 = vld [vmem:[#allocation8 + $0xa8] sm:$0xff]
    %v1094 = vld [vmem:[#allocation8 + $0xb0] sm:$0xff]
    %v1095 = vld [vmem:[#allocation8 + $0xb8] sm:$0xff]
    %v1096 = vld [vmem:[#allocation8 + $0xc0] sm:$0xff]
    %v1097 = vld [vmem:[#allocation8 + $0xc8] sm:$0xff]
    %v1098 = vld [vmem:[#allocation8 + $0xd0] sm:$0xff]
    %v1099 = vld [vmem:[#allocation8 + $0xd8] sm:$0xff]
    %v1100 = vld [vmem:[#allocation8 + $0xe0] sm:$0xff]
    %v1101 = vld [vmem:[#allocation8 + $0xe8] sm:$0xff]
    %v1102 = vld [vmem:[#allocation8 + $0xf0] sm:$0xff]
    %v1103 = vld [vmem:[#allocation8 + $0xf8] sm:$0xff]
    %v1136 = vunpack.c.l.b16 %v1072
    %v1137 = vunpack.c.h.b16 %v1072
    %v1138 = vunpack.c.l.b16 %v1073
    %v1139 = vunpack.c.h.b16 %v1073
    %v1140 = vunpack.c.l.b16 %v1074
    %v1141 = vunpack.c.h.b16 %v1074
    %v1142 = vunpack.c.l.b16 %v1075
    %v1143 = vunpack.c.h.b16 %v1075
    %v1144 = vunpack.c.l.b16 %v1076
    %v1145 = vunpack.c.h.b16 %v1076
    %v1146 = vunpack.c.l.b16 %v1077
    %v1147 = vunpack.c.h.b16 %v1077
    %v1148 = vunpack.c.l.b16 %v1078
    %v1149 = vunpack.c.h.b16 %v1078
    %v1150 = vunpack.c.l.b16 %v1079
    %v1151 = vunpack.c.h.b16 %v1079
    %v1152 = vunpack.c.l.b16 %v1080
    %v1153 = vunpack.c.h.b16 %v1080
    %v1154 = vunpack.c.l.b16 %v1081
    %v1155 = vunpack.c.h.b16 %v1081
    %v1156 = vunpack.c.l.b16 %v1082
    %v1157 = vunpack.c.h.b16 %v1082
    %v1158 = vunpack.c.l.b16 %v1083
    %v1159 = vunpack.c.h.b16 %v1083
    %v1160 = vunpack.c.l.b16 %v1084
    %v1161 = vunpack.c.h.b16 %v1084
    %v1162 = vunpack.c.l.b16 %v1085
    %v1163 = vunpack.c.h.b16 %v1085
    %v1164 = vunpack.c.l.b16 %v1086
    %v1165 = vunpack.c.h.b16 %v1086
    %v1166 = vunpack.c.l.b16 %v1087
    %v1167 = vunpack.c.h.b16 %v1087
    %v1168 = vunpack.c.l.b16 %v1088
    %v1169 = vunpack.c.h.b16 %v1088
    %v1170 = vunpack.c.l.b16 %v1089
    %v1171 = vunpack.c.h.b16 %v1089
    %v1172 = vunpack.c.l.b16 %v1090
    %v1173 = vunpack.c.h.b16 %v1090
    %v1174 = vunpack.c.l.b16 %v1091
    %v1175 = vunpack.c.h.b16 %v1091
    %v1176 = vunpack.c.l.b16 %v1092
    %v1177 = vunpack.c.h.b16 %v1092
    %v1178 = vunpack.c.l.b16 %v1093
    %v1179 = vunpack.c.h.b16 %v1093
    %v1180 = vunpack.c.l.b16 %v1094
    %v1181 = vunpack.c.h.b16 %v1094
    %v1182 = vunpack.c.l.b16 %v1095
    %v1183 = vunpack.c.h.b16 %v1095
    %v1184 = vunpack.c.l.b16 %v1096
    %v1185 = vunpack.c.h.b16 %v1096
    %v1186 = vunpack.c.l.b16 %v1097
    %v1187 = vunpack.c.h.b16 %v1097
    %v1188 = vunpack.c.l.b16 %v1098
    %v1189 = vunpack.c.h.b16 %v1098
    %v1190 = vunpack.c.l.b16 %v1099
    %v1191 = vunpack.c.h.b16 %v1099
    %v1192 = vunpack.c.l.b16 %v1100
    %v1193 = vunpack.c.h.b16 %v1100
    %v1194 = vunpack.c.l.b16 %v1101
    %v1195 = vunpack.c.h.b16 %v1101
    %v1196 = vunpack.c.l.b16 %v1102
    %v1197 = vunpack.c.h.b16 %v1102
    %v1198 = vunpack.c.l.b16 %v1103
    %v1199 = vunpack.c.h.b16 %v1103
    %v1200 = vpack.c.b16 %v1138, %v1136
    %v1201 = vpack.c.b16 %v1139, %v1137
    %v1202 = vpack.c.b16 %v1142, %v1140
    %v1203 = vpack.c.b16 %v1143, %v1141
    %v1204 = vpack.c.b16 %v1146, %v1144
    %v1205 = vpack.c.b16 %v1147, %v1145
    %v1206 = vpack.c.b16 %v1150, %v1148
    %v1207 = vpack.c.b16 %v1151, %v1149
    %v1208 = vpack.c.b16 %v1154, %v1152
    %v1209 = vpack.c.b16 %v1155, %v1153
    %v1210 = vpack.c.b16 %v1158, %v1156
    %v1211 = vpack.c.b16 %v1159, %v1157
    %v1212 = vpack.c.b16 %v1162, %v1160
    %v1213 = vpack.c.b16 %v1163, %v1161
    %v1214 = vpack.c.b16 %v1166, %v1164
    %v1215 = vpack.c.b16 %v1167, %v1165
    %v1216 = vpack.c.b16 %v1170, %v1168
    %v1217 = vpack.c.b16 %v1171, %v1169
    %v1218 = vpack.c.b16 %v1174, %v1172
    %v1219 = vpack.c.b16 %v1175, %v1173
    %v1220 = vpack.c.b16 %v1178, %v1176
    %v1221 = vpack.c.b16 %v1179, %v1177
    %v1222 = vpack.c.b16 %v1182, %v1180
    %v1223 = vpack.c.b16 %v1183, %v1181
    %v1224 = vpack.c.b16 %v1186, %v1184
    %v1225 = vpack.c.b16 %v1187, %v1185
    %v1226 = vpack.c.b16 %v1190, %v1188
    %v1227 = vpack.c.b16 %v1191, %v1189
    %v1228 = vpack.c.b16 %v1194, %v1192
    %v1229 = vpack.c.b16 %v1195, %v1193
    %v1230 = vpack.c.b16 %v1198, %v1196
    %v1231 = vpack.c.b16 %v1199, %v1197
    %1264 = vmatprep.subr.bf16.mxu0 %v1201
    %1265 = vmatpush1.bf16.msra.mxu0 %v1200
    %1266 = vmatprep.subr.bf16.mxu0 %v1203
    %1267 = vmatpush1.bf16.msra.mxu0 %v1202
    %1268 = vmatprep.subr.bf16.mxu0 %v1205
    %1269 = vmatpush1.bf16.msra.mxu0 %v1204
    %1270 = vmatprep.subr.bf16.mxu0 %v1207
    %1271 = vmatpush1.bf16.msra.mxu0 %v1206
    %1272 = vmatprep.subr.bf16.mxu0 %v1209
    %1273 = vmatpush1.bf16.msra.mxu0 %v1208
    %1274 = vmatprep.subr.bf16.mxu0 %v1211
    %1275 = vmatpush1.bf16.msra.mxu0 %v1210
    %1276 = vmatprep.subr.bf16.mxu0 %v1213
    %1277 = vmatpush1.bf16.msra.mxu0 %v1212
    %1278 = vmatprep.subr.bf16.mxu0 %v1215
    %1279 = vmatpush1.bf16.msra.mxu0 %v1214
    %1280 = vmatprep.subr.bf16.mxu0 %v1217
    %1281 = vmatpush1.bf16.msra.mxu0 %v1216
    %1282 = vmatprep.subr.bf16.mxu0 %v1219
    %1283 = vmatpush1.bf16.msra.mxu0 %v1218
    %1284 = vmatprep.subr.bf16.mxu0 %v1221
    %1285 = vmatpush1.bf16.msra.mxu0 %v1220
    %1286 = vmatprep.subr.bf16.mxu0 %v1223
    %1287 = vmatpush1.bf16.msra.mxu0 %v1222
    %1288 = vmatprep.subr.bf16.mxu0 %v1225
    %1289 = vmatpush1.bf16.msra.mxu0 %v1224
    %1290 = vmatprep.subr.bf16.mxu0 %v1227
    %1291 = vmatpush1.bf16.msra.mxu0 %v1226
    %1292 = vmatprep.subr.bf16.mxu0 %v1229
    %1293 = vmatpush1.bf16.msra.mxu0 %v1228
    %1294 = vmatprep.subr.bf16.mxu0 %v1231
    %1295 = vmatpush1.bf16.msra.mxu0 %v1230
    %1296 = vmatprep.mubr.bf16.mxu0 %v1071
    %1297 = vmatmul.mubr.bf16.gmra.mrb[0].mxu0 %v1070
    %v1298 = vpop.f32.mrb[0].mxu0
    %v1299 = vadd.f32 0.0, %v1298
    %v1300 = vpop.f32.mrb[0].mxu0
    %v1301 = vadd.f32 0.0, %v1300
    %v1302 = vpop.f32.mrb[0].mxu0
    %v1303 = vadd.f32 0.0, %v1302
    %v1304 = vpop.f32.mrb[0].mxu0
    %v1305 = vadd.f32 0.0, %v1304
    %1306 = vdwg.mxu0
    %v1307 = vpack.c.bf16 %v1303, %v1299
    %v1308 = vpack.c.bf16 %v1305, %v1301
    %v1311 = vunpack.c.l.b16 %v1307
    %v1312 = vunpack.c.l.b16 %v1308
    %v1313 = vunpack.c.h.b16 %v1307
    %v1314 = vunpack.c.h.b16 %v1308
    %v1315 = vpack.c.b16 %v1312, %v1311
    %v1316 = vpack.c.b16 %v1314, %v1313
    %1319 = vst [vmem:[#allocation9] sm:$0xff] %v1315
    %1320 = vst [vmem:[#allocation9 + $0x8] sm:$0xff] %v1316
    // Predicated region
    $region34: #{tpu_custom_call.1} parent=1 // pred_check
      _
    $region35: #{tpu_custom_call.1} parent=1 // pred_check_branch
      %1322 = sbr.rel (0) target = $region37
    $region36: #{tpu_custom_call.1} parent=1 // pred_region
      %s1324 = ssub.s32 256, 256
      %1325 = vsyncadd [#allocation5], %s1324
      %s1326 = sshll.u32 [#allocation9], 4
      %s1327 = int_to_ptr.vmem [resolvable:$true] %s1326
      %1332 = dma.vmem_to_hbm [thread:$0]  %s1327, 256, %s5, [#allocation5], 128, 128, 8
    $region37: #{tpu_custom_call.1} parent=1 // pred_fallthru
      _
    // Predicated region
    $region38: #{tpu_custom_call.1} parent=1 // pred_check
      _
    $region39: #{tpu_custom_call.1} parent=1 // pred_check_branch
      %1334 = sbr.rel (0) target = $region41
    $region40: #{tpu_custom_call.1} parent=1 // pred_region
      %1335 = dma.done [#allocation5], 256
    $region41: #{tpu_custom_call.1} parent=1 // pred_fallthru
      _
    %1336 = vsyncpa [#allocation4], 1
    %1337 = vsyncpa [#allocation7], 1
    %1338 = vsyncpa [#allocation5], 1

</llo_original>
